<compile_context>
chip_gen: v7x
topology: tpu7x:2x2x1
jax: 0.10.0
libtpu: 0.0.40
codegen_flags: <defaults>
</compile_context>

<pallas_src>
import math

import jax
import jax.numpy as jnp
from jax.experimental import pallas as pl
from jax.experimental.pallas import tpu as pltpu


def _round_up(a, b):
    return ((a + b - 1) // b) * b


def _cdiv(a, b):
    return (a + b - 1) // b


def _make_biasfree_ln_kernel(c_true, c_blk):
    """Closure over Python-only constants (ints/floats), never traced arrays."""
    inv_c = 1.0 / float(c_true)          # Python float -> baked literal
    needs_mask = c_blk != c_true

    def kernel(x_ref, w_ref, o_ref):
        # x_ref: (TR, Cb) tile, w_ref: (1, Cb), o_ref: (TR, Cb).
        # The HBM array is unpadded along C; lanes [c_true, Cb) of the VMEM
        # block hold garbage, so mask them out of the statistics. Pallas masks
        # the corresponding (and any tail-row) stores.
        x = x_ref[...].astype(jnp.float32)
        if needs_mask:
            col = jax.lax.broadcasted_iota(jnp.int32, x.shape, dimension=1)
            x = jnp.where(col < c_true, x, 0.0)

        # One-pass biased variance: E[x^2] - E[x]^2, accumulated in f32.
        s1 = jnp.sum(x, axis=-1, keepdims=True)
        s2 = jnp.sum(x * x, axis=-1, keepdims=True)
        mean = s1 * inv_c
        var = jnp.maximum(s2 * inv_c - mean * mean, 0.0)   # clamp cancellation

        inv = jax.lax.rsqrt(var + 1e-5)                     # EUP rsqrt
        w = w_ref[...].astype(jnp.float32)                  # (1, Cb) broadcast
        # Bias-free LN: mean is NOT subtracted from the output.
        o_ref[...] = (x * inv * w).astype(o_ref.dtype)

    return kernel


def biasfree_layernorm(x, weight, *, row_tile=None):
    """x: (..., C) channels-last; weight: (C,). Normalizes over the last dim.

    Callers holding NCHW conv activations should permute/reshape to (B, H*W, C)
    first (plain-JAX glue), exactly like Restormer's to_3d().
    """
    orig_shape = x.shape
    c = orig_shape[-1]
    rows = math.prod(orig_shape[:-1]) if len(orig_shape) > 1 else 1
    x2 = x.reshape(rows, c)              # contiguous reshape: no HBM copy
    w2 = weight.reshape(1, c)

    itemsize = jnp.dtype(x.dtype).itemsize
    # dtype-aware sublane multiple: 8 for 4-byte, 16 for 2-byte, 32 for 1-byte.
    sublane = {4: 8, 2: 16, 1: 32}.get(itemsize, 8)

    # Block last dim rounded to 128 (lane-dense loads); HBM stays unpadded and
    # the kernel masks dead lanes, so there is no pad/slice HBM round trip.
    c_blk = _round_up(c, 128)

    if row_tile is None:
        # ~24 MiB double-buffered footprint: multi-MiB input tiles (hides the
        # ~0.35 us/step overhead at v6e/v7x HBM BW) while fitting v7x's 64 MiB
        # VMEM per core with headroom.
        budget = 24 * 1024 * 1024
        bytes_per_row = c_blk * (4 * itemsize + 8)   # 2x in + 2x out bufs + f32 temps
        row_tile = max(sublane, budget // bytes_per_row)
    row_tile = max(sublane, (row_tile // sublane) * sublane)
    row_tile = min(row_tile, _round_up(rows, sublane))

    # Keep >= 2 grid steps when the problem would fit a single tile, so v7x's
    # two TensorCores both get work under the "parallel" grid axis.
    if _cdiv(rows, row_tile) < 2 and rows > sublane:
        row_tile = _round_up(_cdiv(rows, 2), sublane)

    grid = (_cdiv(rows, row_tile),)      # partial last block; no row padding

    tile_bytes = row_tile * c_blk * itemsize
    est = 4 * tile_bytes + 3 * row_tile * c_blk * 4 + 4 * c_blk * 4 + (2 << 20)
    vmem_limit = int(min(48 << 20, max(32 << 20, est)))   # safe on v7x's 64 MiB

    out = pl.pallas_call(
        _make_biasfree_ln_kernel(c, c_blk),
        out_shape=jax.ShapeDtypeStruct((rows, c), x.dtype),
        grid_spec=pltpu.PrefetchScalarGridSpec(
            num_scalar_prefetch=0,
            grid=grid,
            in_specs=[
                pl.BlockSpec((row_tile, c_blk), lambda i: (i, 0)),  # x tile
                pl.BlockSpec((1, c_blk), lambda i: (0, 0)),         # shared weight
            ],
            out_specs=pl.BlockSpec((row_tile, c_blk), lambda i: (i, 0)),
        ),
        compiler_params=pltpu.CompilerParams(
            dimension_semantics=("parallel",),   # v7x shards grid steps across 2 TCs
            vmem_limit_bytes=vmem_limit,
        ),
    )(x2, w2)

    return out.reshape(orig_shape)


def biasfree_layernorm_ref(x, weight):
    xf = x.astype(jnp.float32)
    var = jnp.var(xf, axis=-1, keepdims=True)   # biased (ddof=0) == unbiased=False
    return (xf / jnp.sqrt(var + 1e-5) * weight.astype(jnp.float32)).astype(x.dtype)


if __name__ == "__main__":
    key = jax.random.PRNGKey(0)
    B, S, C = 2, 8, 32                     # batch=2, seq=8, hidden=32
    x = jax.random.normal(key, (B, S, C), dtype=jnp.float32)

    # nn.Parameter(torch.ones(normalized_shapes)) -> deterministic ones of shape (C,)
    weight = jnp.ones((C,), dtype=jnp.float32)

    out = biasfree_layernorm(x, weight)
    out = jax.block_until_ready(out)

    ref = biasfree_layernorm_ref(x, weight)
    assert out.shape == x.shape and out.dtype == x.dtype
    assert jnp.max(jnp.abs(out - ref)) < 1e-5, "mismatch vs. reference"

    print("KERNEL_OK")
</pallas_src>

<mosaic_0001>
module attributes {stable_mosaic.version = 11 : i64} {
  func.func @kernel(%arg0: i32, %arg1: memref<8x128xf32, #tpu.memory_space<vmem>>, %arg2: memref<1x128xf32, #tpu.memory_space<vmem>>, %arg3: memref<8x128xf32, #tpu.memory_space<vmem>>) attributes {dimension_semantics = [#tpu.dimension_semantics<parallel>], iteration_bounds = array<i64: 2>, scalar_prefetch = 0 : i64, scratch_operands = 0 : i64, tpu.core_type = #tpu.core_type<tc>, window_params = [{transform_indices = @transform_0, window_bounds = array<i64: 8, 128>}, {transform_indices = @transform_1, window_bounds = array<i64: 1, 128>}, {transform_indices = @transform_2, window_bounds = array<i64: 8, 128>}]} {
    %c0 = arith.constant 0 : index
    %c0_0 = arith.constant 0 : index
    %0 = vector.load %arg1[%c0, %c0_0] : memref<8x128xf32, #tpu.memory_space<vmem>>, vector<8x128xf32>
    %1 = tpu.iota {dimensions = array<i32: 1>} : vector<8x128xi32>
    %c32_i32 = arith.constant 32 : i32
    %2 = vector.broadcast %c32_i32 : i32 to vector<8x128xi32>
    %3 = arith.cmpi slt, %1, %2 : vector<8x128xi32>
    %cst = arith.constant 0.000000e+00 : f32
    %4 = vector.broadcast %cst : f32 to vector<8x128xf32>
    %5 = arith.select %3, %0, %4 : vector<8x128xi1>, vector<8x128xf32>
    %cst_1 = arith.constant dense<0.000000e+00> : vector<8xf32>
    %6 = vector.multi_reduction <add>, %5, %cst_1 [1] : vector<8x128xf32> to vector<8xf32>
    %7 = vector.shape_cast %6 : vector<8xf32> to vector<8x1xf32>
    %8 = arith.mulf %5, %5 : vector<8x128xf32>
    %cst_2 = arith.constant dense<0.000000e+00> : vector<8xf32>
    %9 = vector.multi_reduction <add>, %8, %cst_2 [1] : vector<8x128xf32> to vector<8xf32>
    %10 = vector.shape_cast %9 : vector<8xf32> to vector<8x1xf32>
    %cst_3 = arith.constant 3.125000e-02 : f32
    %11 = vector.broadcast %cst_3 : f32 to vector<8x1xf32>
    %12 = arith.mulf %7, %11 : vector<8x1xf32>
    %cst_4 = arith.constant 3.125000e-02 : f32
    %13 = vector.broadcast %cst_4 : f32 to vector<8x1xf32>
    %14 = arith.mulf %10, %13 : vector<8x1xf32>
    %15 = arith.mulf %12, %12 : vector<8x1xf32>
    %16 = arith.subf %14, %15 : vector<8x1xf32>
    %cst_5 = arith.constant 0.000000e+00 : f32
    %17 = vector.broadcast %cst_5 : f32 to vector<8x1xf32>
    %18 = arith.maximumf %16, %17 : vector<8x1xf32>
    %cst_6 = arith.constant 9.99999974E-6 : f32
    %19 = vector.broadcast %cst_6 : f32 to vector<8x1xf32>
    %20 = arith.addf %18, %19 : vector<8x1xf32>
    %21 = math.rsqrt %20 : vector<8x1xf32>
    %c0_7 = arith.constant 0 : index
    %c0_8 = arith.constant 0 : index
    %22 = vector.load %arg2[%c0_7, %c0_8] : memref<1x128xf32, #tpu.memory_space<vmem>>, vector<1x128xf32>
    %23 = vector.broadcast %21 : vector<8x1xf32> to vector<8x128xf32>
    %24 = arith.mulf %5, %23 : vector<8x128xf32>
    %25 = vector.broadcast %22 : vector<1x128xf32> to vector<8x128xf32>
    %26 = arith.mulf %24, %25 : vector<8x128xf32>
    %c0_9 = arith.constant 0 : index
    %c0_10 = arith.constant 0 : index
    %27 = vector.load %arg3[%c0_9, %c0_10] : memref<8x128xf32, #tpu.memory_space<vmem>>, vector<8x128xf32>
    tpu.vector_store %arg3[%c0_9, %c0_10], %26 {strides = array<i32>} : memref<8x128xf32, #tpu.memory_space<vmem>>, vector<8x128xf32>,
    return
  }
  func.func @transform_0(%arg0: i32) -> (i32, i32) {
    %c0_i32 = arith.constant 0 : i32
    %c0_i32_0 = arith.constant 0 : i32
    return %arg0, %c0_i32 : i32, i32
  }
  func.func @transform_1(%arg0: i32) -> (i32, i32) {
    %c0_i32 = arith.constant 0 : i32
    %c0_i32_0 = arith.constant 0 : i32
    %c0_i32_1 = arith.constant 0 : i32
    return %c0_i32, %c0_i32_0 : i32, i32
  }
  func.func @transform_2(%arg0: i32) -> (i32, i32) {
    %c0_i32 = arith.constant 0 : i32
    %c0_i32_0 = arith.constant 0 : i32
    return %arg0, %c0_i32 : i32, i32
  }
}

</mosaic_0001>

<llo_original>
// kernel: tpu_custom_call.1
$region0: #{tpu_custom_call.1}
  #allocation0 [shape = 'u32[]', space=smem, size = 0x4, offset = 0x4, fixed_abs, tag = 'smem constant byte address 0x4 - core index']
  #allocation1 [shape = 'u32[144,128]{1,0:T(1,128)}', space=vmem, size = 0x12000, scoped, tag = 'internal scratch']
  %s0 = inlined_call_operand.hbm [shape: f32[16,32], index: 0, kind: input, shape index: {}]
  %s1 = inlined_call_operand.vmem [shape: f32[1,32], index: 1, kind: input, shape index: {}]
  %s2 = inlined_call_operand.hbm [shape: f32[16,32], index: 2, kind: output, shape index: {}]
  %s3 = sld [smem:[#allocation0]]
  $region45: #{tpu_custom_call.1} parent=0
    _
  %s5 = ssub.s32 1, %s3
  %s6 = scalar_select 0, %s5, %s3
  $region1: #{tpu_custom_call.1} parent=0
    #allocation2 [shape = 'u8[8192]{0}', space=vmem, size = 0x2000, scoped, tag = 'input window, operand 0']
    #allocation3 [shape = 's32[2]{0}', space=sflag, size = 0x8, scoped, tag = 'scoped memory for tpu_custom_call.1']
    #allocation4 [shape = 's32[2]{0}', space=sflag, size = 0x8, scoped, tag = 'scoped memory for tpu_custom_call.1']
    #allocation5 [shape = 'u8[8192]{0}', space=vmem, size = 0x2000, scoped, tag = 'output window, operand 0']
    %7 = vsyncpa [#allocation3], 0
    %s8 = scalar_lea.sflag [#allocation3], 1
    %9 = vsyncpa %s8, 0
    %10 = vsyncpa [#allocation4], 0
    %s11 = scalar_lea.sflag [#allocation4], 1
    %12 = vsyncpa %s11, 0
    loop: start=0, step=1, limit=4
    $region2: #{tpu_custom_call.1} parent=1 // loop_pre_header
      _
    $region3: #{tpu_custom_call.1} parent=1 // loop_header
      %s14 = sphi 0, %s18
      %p15 = scmp.ge.s32.totalorder %s14, 4
      %s24 = sphi 0, %s26
      %s27 = sphi 0, %s24
      %s28 = sphi 0, %s27
      %s44 = sphi 0, %s28
      %s48 = sphi 0, %s48
      %s50 = sphi 0, %s48
      %s51 = sphi 0, %s50
      %s65 = sphi 0, %s51
      %s71 = sphi 0, %s73
      %s74 = sphi 0, %s71
      %s75 = sphi 0, %s74
      %s91 = sphi 0, %s75
    $region4: #{tpu_custom_call.1} parent=1 // loop_header_branch
      %17 = sbr.rel (%p15) target = $region8
    $region5: #{tpu_custom_call.1} parent=1 // loop_body
      %s19 = ssub.s32 %s14, 1
      %s20 = ssub.s32 %s14, 2
      %s21 = sadd.s32 %s14, 1
      %s22 = ssub.s32 %s14, %s21
      %p23 = scmp.eq.s32.totalorder %s22, 0
      %s25 = sadd.s32 %s24, 1
      %s26 = scalar_select %p23, %s24, %s25
      %p29 = pneg %p23
      %p30 = scmp.eq.s32.totalorder %s14, 1
      %p31 = por %p29, %p30
      %p32 = scmp.ne.s32.totalorder %s24, %s27
      %p33 = scmp.eq.s32.totalorder %s14, 0
      %p34 = por %p32, %p33
      %p35 = scmp.ne.s32.totalorder %s24, %s27
      %p36 = scmp.eq.s32.totalorder %s19, 1
      %p37 = por %p35, %p36
      %p38 = scmp.ne.s32.totalorder %s27, %s28
      %p39 = scmp.eq.s32.totalorder %s19, 0
      %p40 = por %p38, %p39
      %p41 = scmp.ne.s32.totalorder %s27, %s28
      %p42 = scmp.eq.s32.totalorder %s20, 1
      %p43 = por %p41, %p42
      %p45 = scmp.ne.s32.totalorder %s28, %s44
      %p46 = scmp.eq.s32.totalorder %s20, 0
      %p47 = por %p45, %p46
      %s49 = sadd.s32 %s48, 1
      %p52 = scmp.eq.s32.totalorder %s14, 1
      %p53 = scmp.ne.s32.totalorder %s48, %s50
      %p54 = scmp.eq.s32.totalorder %s14, 0
      %p55 = por %p53, %p54
      %p56 = scmp.ne.s32.totalorder %s48, %s50
      %p57 = scmp.eq.s32.totalorder %s19, 1
      %p58 = por %p56, %p57
      %p59 = scmp.ne.s32.totalorder %s50, %s51
      %p60 = scmp.eq.s32.totalorder %s19, 0
      %p61 = por %p59, %p60
      %p62 = scmp.ne.s32.totalorder %s50, %s51
      %p63 = scmp.eq.s32.totalorder %s20, 1
      %p64 = por %p62, %p63
      %p66 = scmp.ne.s32.totalorder %s51, %s65
      %p67 = scmp.eq.s32.totalorder %s20, 0
      %p68 = por %p66, %p67
      %s69 = ssub.s32 %s14, %s21
      %p70 = scmp.eq.s32.totalorder %s69, 0
      %s72 = sadd.s32 %s71, 1
      %s73 = scalar_select %p70, %s71, %s72
      %p76 = pneg %p70
      %p77 = scmp.eq.s32.totalorder %s14, 1
      %p78 = por %p76, %p77
      %p79 = scmp.ne.s32.totalorder %s71, %s74
      %p80 = scmp.eq.s32.totalorder %s14, 0
      %p81 = por %p79, %p80
      %p82 = scmp.ne.s32.totalorder %s71, %s74
      %p83 = scmp.eq.s32.totalorder %s19, 1
      %p84 = por %p82, %p83
      %p85 = scmp.ne.s32.totalorder %s74, %s75
      %p86 = scmp.eq.s32.totalorder %s19, 0
      %p87 = por %p85, %p86
      %p88 = scmp.ne.s32.totalorder %s74, %s75
      %p89 = scmp.eq.s32.totalorder %s20, 1
      %p90 = por %p88, %p89
      %p92 = scmp.ne.s32.totalorder %s75, %s91
      %p93 = scmp.eq.s32.totalorder %s20, 0
      %p94 = por %p92, %p93
      %p95 = scmp.le.s32.totalorder 1, %s14
      %p96 = scmp.lt.s32.totalorder %s14, 3
      %p97 = pnand %p95, %p96
      %p98 = pneg %p97
      // Predicated region
      $region9: #{tpu_custom_call.1} parent=5 // pred_check
        _
      $region10: #{tpu_custom_call.1} parent=5 // pred_check_branch
        %100 = sbr.rel (%p97) target = $region12
      $region11: #{tpu_custom_call.1} parent=5 // pred_region
        %s101 = ssub.s32 %s14, 1
        // Predicated region
        $region13: #{tpu_custom_call.1} parent=11 // pred_check
          %p102 = pneg %p61
        $region14: #{tpu_custom_call.1} parent=11 // pred_check_branch
          %104 = sbr.rel (%p102) target = $region16
        $region15: #{tpu_custom_call.1} parent=11 // pred_region
          _
        $region16: #{tpu_custom_call.1} parent=11 // pred_fallthru
          _
      $region12: #{tpu_custom_call.1} parent=5 // pred_fallthru
        _
      %p105 = scmp.lt.s32.totalorder %s14, 2
      // Predicated region
      $region17: #{tpu_custom_call.1} parent=5 // pred_check
        %p106 = pneg %p105
      $region18: #{tpu_custom_call.1} parent=5 // pred_check_branch
        %108 = sbr.rel (%p106) target = $region20
      $region19: #{tpu_custom_call.1} parent=5 // pred_region
        // Predicated region
        $region21: #{tpu_custom_call.1} parent=19 // pred_check
          %p109 = pneg %p34
        $region22: #{tpu_custom_call.1} parent=19 // pred_check_branch
          %111 = sbr.rel (%p109) target = $region24
        $region23: #{tpu_custom_call.1} parent=19 // pred_region
          %s112 = sand.u32 %s24, 1
          %s113 = scalar_lea.sflag [#allocation3], %s112
          %s114 = sand.u32 %s24, 1
          %s115 = smul.addr %s114, 8
          %s116 = scalar_lea.vmem [#allocation2], %s115
          %s118 = ssub.s32 128, 128
          %119 = vsyncadd %s113, %s118
          %s120 = smul.addr %s14, 128
          %s121 = scalar_lea.hbm %s0, %s120
          %s123 = sshll.u32 %s116, 4
          %s124 = int_to_ptr.vmem [resolvable:$true] %s123
          %126 = dma.hbm_to_vmem [thread:$0]  %s121, 128, %s124, %s113
        $region24: #{tpu_custom_call.1} parent=19 // pred_fallthru
          _
      $region20: #{tpu_custom_call.1} parent=5 // pred_fallthru
        _
      %p127 = scmp.le.s32.totalorder 1, %s14
      %p128 = scmp.lt.s32.totalorder %s14, 3
      %p129 = pnand %p127, %p128
      %p130 = pneg %p129
      // Predicated region
      $region25: #{tpu_custom_call.1} parent=5 // pred_check
        _
      $region26: #{tpu_custom_call.1} parent=5 // pred_check_branch
        %132 = sbr.rel (%p129) target = $region28
      $region27: #{tpu_custom_call.1} parent=5 // pred_region
        %s133 = ssub.s32 %s14, 1
        %s134 = sand.u32 %s27, 1
        %s135 = scalar_lea.sflag [#allocation3], %s134
        %s136 = sand.u32 %s27, 1
        %s137 = smul.addr %s136, 8
        %s138 = scalar_lea.vmem [#allocation2], %s137
        // Predicated region
        $region29: #{tpu_custom_call.1} parent=27 // pred_check
          %p139 = pneg %p40
        $region30: #{tpu_custom_call.1} parent=27 // pred_check_branch
          %141 = sbr.rel (%p139) target = $region32
        $region31: #{tpu_custom_call.1} parent=27 // pred_region
          %142 = dma.done %s135, 128
        $region32: #{tpu_custom_call.1} parent=27 // pred_fallthru
          _
        %s143 = sand.u32 %s27, 1
        %s144 = scalar_lea.sflag [#allocation3], %s143
        %s145 = sand.u32 %s27, 1
        %s146 = smul.addr %s145, 8
        %s147 = scalar_lea.vmem [#allocation2], %s146
        %p148 = pneg %p40
        %p149 = pneg %p37
        %p150 = pneg %p61
        %p151 = pneg %p58
        %p152 = pneg %p87
        %p153 = pneg %p84
        %s154 = sand.u32 %s74, 1
        %s155 = scalar_lea.sflag [#allocation4], %s154
        %s156 = sand.u32 %s74, 1
        %s157 = smul.addr %s156, 8
        %s158 = scalar_lea.vmem [#allocation5], %s157
        %v159 = vld [vmem:[%s138] sm:$0xff]
        %v160 = vlaneseq
        %v161 = vand.u32 %v160, 127
        %vm162 = vcmp.lt.s32.totalorder %v161, 32
        %v163 = vsel %vm162, %v159, 0.0
        %164 = vadd.xlane.f32.xlu0 %v163
        %v165 = vpop.xlane.xlu0 %164
        %v166 = vmul.f32 %v163, %v163
        %167 = vadd.xlane.f32.xlu0 %v166
        %v168 = vpop.xlane.xlu0 %167
        %v169 = vmul.f32 %v165, 0.03125
        %v170 = vmul.f32 %v168, 0.03125
        %v171 = vmul.f32 %v169, %v169
        %v172 = vsub.f32 %v170, %v171
        %v173 = vmax.f32 %v172, 0.0
        %v174 = vadd.f32 %v173, 1e-05
        %v175 = vrsqrt.pop %v174
        %v176 = vld [vmem:[%s1] sm:$0x1]
        %v177 = vmul.f32 %v163, %v175
        %v179 = vlaneseq
        %v180 = vshrl.u32 %v179, 7
        %v181 = vsub.s32 0, %v180
        %v182 = vrot.slane %v176, %v181
        %v184 = vmul.f32 %v177, %v182
        %185 = vst [vmem:[%s158] sm:$0xff] %v184
        %s186 = sand.u32 %s74, 1
        %s187 = scalar_lea.sflag [#allocation4], %s186
        %s188 = sand.u32 %s74, 1
        %s189 = smul.addr %s188, 8
        %s190 = scalar_lea.vmem [#allocation5], %s189
        // Predicated region
        $region33: #{tpu_custom_call.1} parent=27 // pred_check
          %p191 = pneg %p84
        $region34: #{tpu_custom_call.1} parent=27 // pred_check_branch
          %193 = sbr.rel (%p191) target = $region36
        $region35: #{tpu_custom_call.1} parent=27 // pred_region
          %s195 = ssub.s32 128, 128
          %196 = vsyncadd %s187, %s195
          %s197 = smul.addr %s19, 128
          %s198 = scalar_lea.hbm %s2, %s197
          %s200 = sshll.u32 %s190, 4
          %s201 = int_to_ptr.vmem [resolvable:$true] %s200
          %203 = dma.vmem_to_hbm [thread:$0]  %s201, 128, %s198, %s187
        $region36: #{tpu_custom_call.1} parent=27 // pred_fallthru
          _
      $region28: #{tpu_custom_call.1} parent=5 // pred_fallthru
        _
      %p204 = scmp.le.s32.totalorder 2, %s14
      // Predicated region
      $region37: #{tpu_custom_call.1} parent=5 // pred_check
        %p205 = pneg %p204
      $region38: #{tpu_custom_call.1} parent=5 // pred_check_branch
        %207 = sbr.rel (%p205) target = $region40
      $region39: #{tpu_custom_call.1} parent=5 // pred_region
        %s208 = ssub.s32 %s14, 2
        // Predicated region
        $region41: #{tpu_custom_call.1} parent=39 // pred_check
          %p209 = pneg %p90
        $region42: #{tpu_custom_call.1} parent=39 // pred_check_branch
          %211 = sbr.rel (%p209) target = $region44
        $region43: #{tpu_custom_call.1} parent=39 // pred_region
          %s212 = sand.u32 %s75, 1
          %s213 = scalar_lea.sflag [#allocation4], %s212
          %s214 = sand.u32 %s75, 1
          %s215 = smul.addr %s214, 8
          %s216 = scalar_lea.vmem [#allocation5], %s215
          %217 = dma.done %s213, 128
        $region44: #{tpu_custom_call.1} parent=39 // pred_fallthru
          _
      $region40: #{tpu_custom_call.1} parent=5 // pred_fallthru
        _
    $region6: #{tpu_custom_call.1} parent=1 // loop_footer
      %s18 = sadd.s32 1, %s14
    $region7: #{tpu_custom_call.1} parent=1 // loop_footer_branch
      %13 = sbr.rel target = $region3
    $region8: #{tpu_custom_call.1} parent=1 // loop_exit
      _
    %218 = vsyncpa [#allocation3], 1
    %s219 = scalar_lea.sflag [#allocation3], 1
    %220 = vsyncpa %s219, 1
    %221 = vsyncpa [#allocation4], 1
    %s222 = scalar_lea.sflag [#allocation4], 1
    %223 = vsyncpa %s222, 1

</llo_original>
